<compile_context>
chip_gen: v7x
topology: tpu7x:2x2x1
jax: 0.10.0
libtpu: 0.0.40
codegen_flags: <defaults>
</compile_context>

<pallas_src>
import functools

import jax
import jax.numpy as jnp
from jax.experimental import pallas as pl
from jax.experimental.pallas import tpu as pltpu

LANE = 128


def _round_up(x, m):
    return ((x + m - 1) // m) * m


def _fused_gcn_kernel(a_ref, h_ref, w_ref, b_ref, o_ref, *, acts):
    """Fused multi-layer GraphConv: h <- act(A @ (h @ W_l) + b_l), all in VMEM.

    a_ref : (N_PAD, N_PAD)     bf16   normalized adjacency (zero padded)
    h_ref : (N_PAD, F_PAD)     bf16   input features       (zero padded)
    w_ref : (L, F_PAD, F_PAD)  bf16   per-layer weights     (zero padded)
    b_ref : (L, 1, F_PAD)      f32    per-layer biases      (zero padded)
    o_ref : (N_PAD, F_PAD)     f32    output of last layer
    """
    a = a_ref[...]              # (N_PAD, N_PAD) bf16, loaded once, reused all layers
    h = h_ref[...]              # (N_PAD, F_PAD) bf16
    b_all = b_ref[...]          # (L, 1, F_PAD)  f32 (tiny)

    n_layers = len(acts)
    for l, relu in enumerate(acts):      # static unroll over layers
        w = w_ref[l]                     # (F_PAD, F_PAD) bf16
        # Feature transform (MXU, bf16 in / f32 acc)
        hw = jnp.dot(h, w, preferred_element_type=jnp.float32)
        # Neighbor aggregation (MXU, bf16 in / f32 acc)
        agg = jnp.dot(a, hw.astype(jnp.bfloat16),
                      preferred_element_type=jnp.float32)
        out = agg + b_all[l]             # broadcast (1, F_PAD)
        if relu:
            out = jnp.maximum(out, 0.0)
        if l == n_layers - 1:
            o_ref[...] = out.astype(o_ref.dtype)
        else:
            h = out.astype(jnp.bfloat16)  # stay resident, bf16 for next MXU pass


def gcn_forward(a_hat, features, params):
    """Run the full GraphConv stack in one fused Pallas kernel.

    a_hat    : (N, N) f32 normalized adjacency
    features : (N, F_in) f32
    params   : list of (W (F_in, F_out) f32, b (1, F_out) f32, apply_relu bool)
    returns  : (N, n_classes) f32
    """
    n, f_in = features.shape
    n_classes = params[-1][0].shape[1]
    n_layers = len(params)

    max_f = max([f_in] + [w.shape[1] for (w, _, _) in params])
    f_pad = _round_up(max_f, LANE)
    n_pad = _round_up(n, LANE)

    # Zero-pad everything (padded nodes / features contribute exactly 0 to the
    # real outputs, so results are unchanged after slicing).
    a_pad = jnp.zeros((n_pad, n_pad), jnp.float32).at[:n, :n].set(a_hat)
    h_pad = jnp.zeros((n_pad, f_pad), jnp.float32).at[:n, :f_in].set(features)

    w_stack = jnp.zeros((n_layers, f_pad, f_pad), jnp.float32)
    b_stack = jnp.zeros((n_layers, 1, f_pad), jnp.float32)
    acts = []
    for l, (w, b, act) in enumerate(params):
        fi, fo = w.shape
        w_stack = w_stack.at[l, :fi, :fo].set(w)
        b_stack = b_stack.at[l, :, :fo].set(b)
        acts.append(bool(act))
    acts = tuple(acts)

    a_bf16 = a_pad.astype(jnp.bfloat16)
    h_bf16 = h_pad.astype(jnp.bfloat16)
    w_bf16 = w_stack.astype(jnp.bfloat16)

    kernel = functools.partial(_fused_gcn_kernel, acts=acts)

    flops = n_layers * (2 * n_pad * f_pad * f_pad + 2 * n_pad * n_pad * f_pad)
    bytes_accessed = (a_bf16.size * 2 + h_bf16.size * 2 + w_bf16.size * 2
                      + b_stack.size * 4 + n_pad * f_pad * 4)

    out_pad = pl.pallas_call(
        kernel,
        out_shape=jax.ShapeDtypeStruct((n_pad, f_pad), jnp.float32),
        grid_spec=pltpu.PrefetchScalarGridSpec(
            num_scalar_prefetch=0,
            grid=(1,),
            in_specs=[
                pl.BlockSpec((n_pad, n_pad), lambda i: (0, 0)),
                pl.BlockSpec((n_pad, f_pad), lambda i: (0, 0)),
                pl.BlockSpec((n_layers, f_pad, f_pad), lambda i: (0, 0, 0)),
                pl.BlockSpec((n_layers, 1, f_pad), lambda i: (0, 0, 0)),
            ],
            out_specs=pl.BlockSpec((n_pad, f_pad), lambda i: (0, 0)),
        ),
        compiler_params=pltpu.CompilerParams(
            dimension_semantics=("arbitrary",),
        ),
        cost_estimate=pl.CostEstimate(
            flops=flops, transcendentals=0, bytes_accessed=bytes_accessed),
    )(a_bf16, h_bf16, w_bf16, b_stack)

    # Slice back to real nodes / real classes.
    return out_pad[:n, :n_classes]


def build_normalized_adjacency(key, n_nodes, p_edge=0.15):
    """Random directed graph -> DGL norm='both' normalized adjacency.

    A[i, j] = 1 means edge i -> j.  GraphConv aggregates over in-edges of dst:
        H_agg = D_in^{-1/2} A^T D_out^{-1/2} H
    Degrees clamped to min 1 (matches DGL's clamp; allow_zero_in_degree=True).
    """
    adj = (jax.random.uniform(key, (n_nodes, n_nodes)) < p_edge).astype(jnp.float32)
    out_deg = jnp.clip(adj.sum(axis=1), 1.0, None)  # per source node
    in_deg = jnp.clip(adj.sum(axis=0), 1.0, None)   # per destination node
    d_out_inv_sqrt = 1.0 / jnp.sqrt(out_deg)
    d_in_inv_sqrt = 1.0 / jnp.sqrt(in_deg)
    # A_hat[j, i] = d_in[j]^-1/2 * A[i, j] * d_out[i]^-1/2
    a_hat = d_in_inv_sqrt[:, None] * adj.T * d_out_inv_sqrt[None, :]
    return a_hat


def glorot_uniform(key, shape):
    fan_in, fan_out = shape
    limit = jnp.sqrt(6.0 / (fan_in + fan_out))
    return jax.random.uniform(key, shape, jnp.float32, -limit, limit)


def init_gcn_params(key, in_feats, n_hidden, n_classes, n_layers):
    """Mirrors DROPEDGE.__init__: n_layers hidden GraphConvs (+activation) + output layer."""
    if n_layers == 0:
        dims = [(in_feats, n_classes, False)]
    else:
        dims = [(in_feats, n_hidden, True)]
        for _ in range(n_layers - 1):
            dims.append((n_hidden, n_hidden, True))
        dims.append((n_hidden, n_classes, False))
    keys = jax.random.split(key, len(dims))
    params = []
    for k, (fi, fo, act) in zip(keys, dims):
        w = glorot_uniform(k, (fi, fo))          # DGL: xavier_uniform_
        b = jnp.zeros((1, fo), jnp.float32)      # DGL: zeros_
        params.append((w, b, act))
    return params


if __name__ == "__main__":
    key = jax.random.PRNGKey(0)
    k_graph, k_feat, k_param = jax.random.split(key, 3)

    N_NODES = 64
    IN_FEATS = 16
    N_HIDDEN = 32
    N_CLASSES = 8
    N_LAYERS = 2  # -> 3 GraphConv layers total

    a_hat = build_normalized_adjacency(k_graph, N_NODES)
    features = jax.random.normal(k_feat, (N_NODES, IN_FEATS), jnp.float32)
    params = init_gcn_params(k_param, IN_FEATS, N_HIDDEN, N_CLASSES, N_LAYERS)

    out = gcn_forward(a_hat, features, params)
    out = jax.block_until_ready(out)
    assert out.shape == (N_NODES, N_CLASSES)
    assert jnp.all(jnp.isfinite(out))
    print("KERNEL_OK")
</pallas_src>

<mosaic_0001>
module attributes {stable_mosaic.version = 11 : i64} {
  func.func @_fused_gcn_kernel(%arg0: i32, %arg1: memref<128x128xbf16, #tpu.memory_space<vmem>>, %arg2: memref<128x128xbf16, #tpu.memory_space<vmem>>, %arg3: memref<3x128x128xbf16, #tpu.memory_space<vmem>>, %arg4: memref<3x1x128xf32, #tpu.memory_space<vmem>>, %arg5: memref<128x128xf32, #tpu.memory_space<vmem>>) attributes {dimension_semantics = [#tpu.dimension_semantics<arbitrary>], iteration_bounds = array<i64: 1>, scalar_prefetch = 0 : i64, scratch_operands = 0 : i64, tpu.core_type = #tpu.core_type<tc>, window_params = [{pipeline_mode = #tpu.pipeline_mode<synchronous>, transform_indices = @transform_0, window_bounds = array<i64: 128, 128>}, {pipeline_mode = #tpu.pipeline_mode<synchronous>, transform_indices = @transform_1, window_bounds = array<i64: 128, 128>}, {pipeline_mode = #tpu.pipeline_mode<synchronous>, transform_indices = @transform_2, window_bounds = array<i64: 3, 128, 128>}, {pipeline_mode = #tpu.pipeline_mode<synchronous>, transform_indices = @transform_3, window_bounds = array<i64: 3, 1, 128>}, {pipeline_mode = #tpu.pipeline_mode<synchronous>, transform_indices = @transform_4, window_bounds = array<i64: 128, 128>}]} {
    %c0 = arith.constant 0 : index
    %c0_0 = arith.constant 0 : index
    %0 = vector.load %arg1[%c0, %c0_0] : memref<128x128xbf16, #tpu.memory_space<vmem>>, vector<128x128xbf16>
    %c0_1 = arith.constant 0 : index
    %c0_2 = arith.constant 0 : index
    %1 = vector.load %arg2[%c0_1, %c0_2] : memref<128x128xbf16, #tpu.memory_space<vmem>>, vector<128x128xbf16>
    %c0_3 = arith.constant 0 : index
    %c0_4 = arith.constant 0 : index
    %c0_5 = arith.constant 0 : index
    %2 = vector.load %arg4[%c0_3, %c0_4, %c0_5] : memref<3x1x128xf32, #tpu.memory_space<vmem>>, vector<3x1x128xf32>
    %c0_6 = arith.constant 0 : index
    %c0_7 = arith.constant 0 : index
    %c0_8 = arith.constant 0 : index
    %3 = vector.load %arg3[%c0_6, %c0_7, %c0_8] : memref<3x128x128xbf16, #tpu.memory_space<vmem>>, vector<1x128x128xbf16>
    %4 = vector.shape_cast %3 : vector<1x128x128xbf16> to vector<128x128xbf16>
    %cst = arith.constant dense<0.000000e+00> : vector<128x128xf32>
    %5 = tpu.matmul %1, %4, %cst {dimension_numbers = #tpu.dot_dimension_numbers<[1], [0], [0], [1], [0, 0, 1, 1], [], []>} : vector<128x128xbf16>, vector<128x128xbf16>, vector<128x128xf32> -> vector<128x128xf32>
    %6 = arith.truncf %5 : vector<128x128xf32> to vector<128x128xbf16>
    %cst_9 = arith.constant dense<0.000000e+00> : vector<128x128xf32>
    %7 = tpu.matmul %0, %6, %cst_9 {dimension_numbers = #tpu.dot_dimension_numbers<[1], [0], [0], [1], [0, 0, 1, 1], [], []>} : vector<128x128xbf16>, vector<128x128xbf16>, vector<128x128xf32> -> vector<128x128xf32>
    %8 = vector.extract_strided_slice %2 {offsets = [0, 0, 0], sizes = [1, 1, 128], strides = [1, 1, 1]} : vector<3x1x128xf32> to vector<1x1x128xf32>
    %9 = vector.shape_cast %8 : vector<1x1x128xf32> to vector<1x128xf32>
    %10 = vector.broadcast %9 : vector<1x128xf32> to vector<128x128xf32>
    %11 = arith.addf %7, %10 : vector<128x128xf32>
    %cst_10 = arith.constant 0.000000e+00 : f32
    %12 = vector.broadcast %cst_10 : f32 to vector<128x128xf32>
    %13 = arith.maximumf %11, %12 : vector<128x128xf32>
    %14 = arith.truncf %13 : vector<128x128xf32> to vector<128x128xbf16>
    %c1 = arith.constant 1 : index
    %c0_11 = arith.constant 0 : index
    %c0_12 = arith.constant 0 : index
    %15 = vector.load %arg3[%c1, %c0_11, %c0_12] : memref<3x128x128xbf16, #tpu.memory_space<vmem>>, vector<1x128x128xbf16>
    %16 = vector.shape_cast %15 : vector<1x128x128xbf16> to vector<128x128xbf16>
    %cst_13 = arith.constant dense<0.000000e+00> : vector<128x128xf32>
    %17 = tpu.matmul %14, %16, %cst_13 {dimension_numbers = #tpu.dot_dimension_numbers<[1], [0], [0], [1], [0, 0, 1, 1], [], []>} : vector<128x128xbf16>, vector<128x128xbf16>, vector<128x128xf32> -> vector<128x128xf32>
    %18 = arith.truncf %17 : vector<128x128xf32> to vector<128x128xbf16>
    %cst_14 = arith.constant dense<0.000000e+00> : vector<128x128xf32>
    %19 = tpu.matmul %0, %18, %cst_14 {dimension_numbers = #tpu.dot_dimension_numbers<[1], [0], [0], [1], [0, 0, 1, 1], [], []>} : vector<128x128xbf16>, vector<128x128xbf16>, vector<128x128xf32> -> vector<128x128xf32>
    %20 = vector.extract_strided_slice %2 {offsets = [1, 0, 0], sizes = [1, 1, 128], strides = [1, 1, 1]} : vector<3x1x128xf32> to vector<1x1x128xf32>
    %21 = vector.shape_cast %20 : vector<1x1x128xf32> to vector<1x128xf32>
    %22 = vector.broadcast %21 : vector<1x128xf32> to vector<128x128xf32>
    %23 = arith.addf %19, %22 : vector<128x128xf32>
    %cst_15 = arith.constant 0.000000e+00 : f32
    %24 = vector.broadcast %cst_15 : f32 to vector<128x128xf32>
    %25 = arith.maximumf %23, %24 : vector<128x128xf32>
    %26 = arith.truncf %25 : vector<128x128xf32> to vector<128x128xbf16>
    %c2 = arith.constant 2 : index
    %c0_16 = arith.constant 0 : index
    %c0_17 = arith.constant 0 : index
    %27 = vector.load %arg3[%c2, %c0_16, %c0_17] : memref<3x128x128xbf16, #tpu.memory_space<vmem>>, vector<1x128x128xbf16>
    %28 = vector.shape_cast %27 : vector<1x128x128xbf16> to vector<128x128xbf16>
    %cst_18 = arith.constant dense<0.000000e+00> : vector<128x128xf32>
    %29 = tpu.matmul %26, %28, %cst_18 {dimension_numbers = #tpu.dot_dimension_numbers<[1], [0], [0], [1], [0, 0, 1, 1], [], []>} : vector<128x128xbf16>, vector<128x128xbf16>, vector<128x128xf32> -> vector<128x128xf32>
    %30 = arith.truncf %29 : vector<128x128xf32> to vector<128x128xbf16>
    %cst_19 = arith.constant dense<0.000000e+00> : vector<128x128xf32>
    %31 = tpu.matmul %0, %30, %cst_19 {dimension_numbers = #tpu.dot_dimension_numbers<[1], [0], [0], [1], [0, 0, 1, 1], [], []>} : vector<128x128xbf16>, vector<128x128xbf16>, vector<128x128xf32> -> vector<128x128xf32>
    %32 = vector.extract_strided_slice %2 {offsets = [2, 0, 0], sizes = [1, 1, 128], strides = [1, 1, 1]} : vector<3x1x128xf32> to vector<1x1x128xf32>
    %33 = vector.shape_cast %32 : vector<1x1x128xf32> to vector<1x128xf32>
    %34 = vector.broadcast %33 : vector<1x128xf32> to vector<128x128xf32>
    %35 = arith.addf %31, %34 : vector<128x128xf32>
    %c0_20 = arith.constant 0 : index
    %c0_21 = arith.constant 0 : index
    %36 = vector.load %arg5[%c0_20, %c0_21] : memref<128x128xf32, #tpu.memory_space<vmem>>, vector<128x128xf32>
    tpu.vector_store %arg5[%c0_20, %c0_21], %35 {strides = array<i32>} : memref<128x128xf32, #tpu.memory_space<vmem>>, vector<128x128xf32>,
    return
  }
  func.func @transform_0(%arg0: i32) -> (i32, i32) {
    %c0_i32 = arith.constant 0 : i32
    %c0_i32_0 = arith.constant 0 : i32
    %c0_i32_1 = arith.constant 0 : i32
    return %c0_i32, %c0_i32_0 : i32, i32
  }
  func.func @transform_1(%arg0: i32) -> (i32, i32) {
    %c0_i32 = arith.constant 0 : i32
    %c0_i32_0 = arith.constant 0 : i32
    %c0_i32_1 = arith.constant 0 : i32
    return %c0_i32, %c0_i32_0 : i32, i32
  }
  func.func @transform_2(%arg0: i32) -> (i32, i32, i32) {
    %c0_i32 = arith.constant 0 : i32
    %c0_i32_0 = arith.constant 0 : i32
    %c0_i32_1 = arith.constant 0 : i32
    %c0_i32_2 = arith.constant 0 : i32
    return %c0_i32, %c0_i32_0, %c0_i32_1 : i32, i32, i32
  }
  func.func @transform_3(%arg0: i32) -> (i32, i32, i32) {
    %c0_i32 = arith.constant 0 : i32
    %c0_i32_0 = arith.constant 0 : i32
    %c0_i32_1 = arith.constant 0 : i32
    %c0_i32_2 = arith.constant 0 : i32
    return %c0_i32, %c0_i32_0, %c0_i32_1 : i32, i32, i32
  }
  func.func @transform_4(%arg0: i32) -> (i32, i32) {
    %c0_i32 = arith.constant 0 : i32
    %c0_i32_0 = arith.constant 0 : i32
    %c0_i32_1 = arith.constant 0 : i32
    return %c0_i32, %c0_i32_0 : i32, i32
  }
}

</mosaic_0001>

<llo_original>
// kernel: tpu_custom_call.1
$region0: #{tpu_custom_call.1}
  #allocation0 [shape = 'u32[]', space=smem, size = 0x4, offset = 0x4, fixed_abs, tag = 'smem constant byte address 0x4 - core index']
  #allocation1 [shape = 'u32[144,128]{1,0:T(1,128)}', space=vmem, size = 0x12000, scoped, tag = 'internal scratch']
  %s0 = inlined_call_operand.hbm [shape: bf16[128,128], index: 0, kind: input, shape index: {}]
  %s1 = inlined_call_operand.hbm [shape: bf16[128,128], index: 1, kind: input, shape index: {}]
  %s2 = inlined_call_operand.hbm [shape: bf16[3,128,128], index: 2, kind: input, shape index: {}]
  %s3 = inlined_call_operand.vmem [shape: f32[3,1,128], index: 3, kind: input, shape index: {}]
  %s4 = inlined_call_operand.hbm [shape: f32[128,128], index: 4, kind: output, shape index: {}]
  %s5 = sld [smem:[#allocation0]]
  $region38: #{tpu_custom_call.1} parent=0
    _
  %s7 = ssub.s32 1, %s5
  %s8 = scalar_select 0, %s7, %s5
  $region1: #{tpu_custom_call.1} parent=0
    #allocation2 [shape = 'u8[32768]{0}', space=vmem, size = 0x8000, scoped, tag = 'input window, operand 0, single buffered']
    #allocation3 [shape = 's32[1]{0}', space=sflag, size = 0x4, scoped, tag = 'scoped memory for tpu_custom_call.1']
    #allocation4 [shape = 's32[1]{0}', space=sflag, size = 0x4, scoped, tag = 'scoped memory for tpu_custom_call.1']
    #allocation5 [shape = 'u8[32768]{0}', space=vmem, size = 0x8000, scoped, tag = 'input window, operand 1, single buffered']
    #allocation6 [shape = 's32[1]{0}', space=sflag, size = 0x4, scoped, tag = 'scoped memory for tpu_custom_call.1']
    #allocation7 [shape = 'u8[98304]{0}', space=vmem, size = 0x18000, scoped, tag = 'input window, operand 2, single buffered']
    #allocation8 [shape = 'u8[65536]{0}', space=vmem, size = 0x10000, scoped, tag = 'output window, operand 0, single buffered']
    %9 = vsyncpa [#allocation3], 0
    %10 = vsyncpa [#allocation6], 0
    %11 = vsyncpa [#allocation4], 0
    // Predicated region
    $region2: #{tpu_custom_call.1} parent=1 // pred_check
      _
    $region3: #{tpu_custom_call.1} parent=1 // pred_check_branch
      %13 = sbr.rel (0) target = $region5
    $region4: #{tpu_custom_call.1} parent=1 // pred_region
      %s15 = ssub.s32 1024, 1024
      %16 = vsyncadd [#allocation3], %s15
      %s17 = sshll.u32 [#allocation2], 4
      %s18 = int_to_ptr.vmem [resolvable:$true] %s17
      %23 = dma.hbm_to_vmem [thread:$0]  %s0, 1024, %s18, [#allocation3], 64, 64, 4
    $region5: #{tpu_custom_call.1} parent=1 // pred_fallthru
      _
    // Predicated region
    $region6: #{tpu_custom_call.1} parent=1 // pred_check
      _
    $region7: #{tpu_custom_call.1} parent=1 // pred_check_branch
      %25 = sbr.rel (0) target = $region9
    $region8: #{tpu_custom_call.1} parent=1 // pred_region
      %s27 = ssub.s32 1024, 1024
      %28 = vsyncadd [#allocation6], %s27
      %s29 = sshll.u32 [#allocation5], 4
      %s30 = int_to_ptr.vmem [resolvable:$true] %s29
      %35 = dma.hbm_to_vmem [thread:$0]  %s1, 1024, %s30, [#allocation6], 64, 64, 4
    $region9: #{tpu_custom_call.1} parent=1 // pred_fallthru
      _
    // Predicated region
    $region10: #{tpu_custom_call.1} parent=1 // pred_check
      _
    $region11: #{tpu_custom_call.1} parent=1 // pred_check_branch
      %37 = sbr.rel (0) target = $region13
    $region12: #{tpu_custom_call.1} parent=1 // pred_region
      %s39 = ssub.s32 3072, 3072
      %40 = vsyncadd [#allocation6], %s39
      %s41 = sshll.u32 [#allocation7], 4
      %s42 = int_to_ptr.vmem [resolvable:$true] %s41
      %47 = dma.hbm_to_vmem [thread:$0]  %s2, 3072, %s42, [#allocation6], 64, 64, 4
    $region13: #{tpu_custom_call.1} parent=1 // pred_fallthru
      _
    // Predicated region
    $region14: #{tpu_custom_call.1} parent=1 // pred_check
      _
    $region15: #{tpu_custom_call.1} parent=1 // pred_check_branch
      %49 = sbr.rel (0) target = $region17
    $region16: #{tpu_custom_call.1} parent=1 // pred_region
      _
    $region17: #{tpu_custom_call.1} parent=1 // pred_fallthru
      _
    // Predicated region
    $region18: #{tpu_custom_call.1} parent=1 // pred_check
      _
    $region19: #{tpu_custom_call.1} parent=1 // pred_check_branch
      %51 = sbr.rel (0) target = $region21
    $region20: #{tpu_custom_call.1} parent=1 // pred_region
      %52 = dma.done [#allocation3], 1024
    $region21: #{tpu_custom_call.1} parent=1 // pred_fallthru
      _
    // Predicated region
    $region22: #{tpu_custom_call.1} parent=1 // pred_check
      _
    $region23: #{tpu_custom_call.1} parent=1 // pred_check_branch
      %54 = sbr.rel (0) target = $region25
    $region24: #{tpu_custom_call.1} parent=1 // pred_region
      %55 = dma.done [#allocation6], 1024
    $region25: #{tpu_custom_call.1} parent=1 // pred_fallthru
      _
    // Predicated region
    $region26: #{tpu_custom_call.1} parent=1 // pred_check
      _
    $region27: #{tpu_custom_call.1} parent=1 // pred_check_branch
      %57 = sbr.rel (0) target = $region29
    $region28: #{tpu_custom_call.1} parent=1 // pred_region
      %58 = dma.done [#allocation6], 3072
    $region29: #{tpu_custom_call.1} parent=1 // pred_fallthru
      _
    %v60 = vld [vmem:[#allocation2] sm:$0xf]
    %v61 = vld [vmem:[#allocation2 + $0x4] sm:$0xf]
    %v62 = vld [vmem:[#allocation2 + $0x8] sm:$0xf]
    %v63 = vld [vmem:[#allocation2 + $0xc] sm:$0xf]
    %v64 = vld [vmem:[#allocation2 + $0x10] sm:$0xf]
    %v65 = vld [vmem:[#allocation2 + $0x14] sm:$0xf]
    %v66 = vld [vmem:[#allocation2 + $0x18] sm:$0xf]
    %v67 = vld [vmem:[#allocation2 + $0x1c] sm:$0xf]
    %v68 = vld [vmem:[#allocation2 + $0x20] sm:$0xf]
    %v69 = vld [vmem:[#allocation2 + $0x24] sm:$0xf]
    %v70 = vld [vmem:[#allocation2 + $0x28] sm:$0xf]
    %v71 = vld [vmem:[#allocation2 + $0x2c] sm:$0xf]
    %v72 = vld [vmem:[#allocation2 + $0x30] sm:$0xf]
    %v73 = vld [vmem:[#allocation2 + $0x34] sm:$0xf]
    %v74 = vld [vmem:[#allocation2 + $0x38] sm:$0xf]
    %v75 = vld [vmem:[#allocation2 + $0x3c] sm:$0xf]
    %v76 = vld [vmem:[#allocation5] sm:$0xf]
    %v77 = vld [vmem:[#allocation5 + $0x4] sm:$0xf]
    %v78 = vld [vmem:[#allocation5 + $0x8] sm:$0xf]
    %v79 = vld [vmem:[#allocation5 + $0xc] sm:$0xf]
    %v80 = vld [vmem:[#allocation5 + $0x10] sm:$0xf]
    %v81 = vld [vmem:[#allocation5 + $0x14] sm:$0xf]
    %v82 = vld [vmem:[#allocation5 + $0x18] sm:$0xf]
    %v83 = vld [vmem:[#allocation5 + $0x1c] sm:$0xf]
    %v84 = vld [vmem:[#allocation5 + $0x20] sm:$0xf]
    %v85 = vld [vmem:[#allocation5 + $0x24] sm:$0xf]
    %v86 = vld [vmem:[#allocation5 + $0x28] sm:$0xf]
    %v87 = vld [vmem:[#allocation5 + $0x2c] sm:$0xf]
    %v88 = vld [vmem:[#allocation5 + $0x30] sm:$0xf]
    %v89 = vld [vmem:[#allocation5 + $0x34] sm:$0xf]
    %v90 = vld [vmem:[#allocation5 + $0x38] sm:$0xf]
    %v91 = vld [vmem:[#allocation5 + $0x3c] sm:$0xf]
    %v92 = vld [vmem:[%s3] sm:$0x1]
    %v93 = vld [vmem:[%s3 + $0x1] sm:$0x1]
    %v94 = vld [vmem:[%s3 + $0x2] sm:$0x1]
    %v95 = vld [vmem:[#allocation7] sm:$0xf]
    %v96 = vld [vmem:[#allocation7 + $0x4] sm:$0xf]
    %v97 = vld [vmem:[#allocation7 + $0x8] sm:$0xf]
    %v98 = vld [vmem:[#allocation7 + $0xc] sm:$0xf]
    %v99 = vld [vmem:[#allocation7 + $0x10] sm:$0xf]
    %v100 = vld [vmem:[#allocation7 + $0x14] sm:$0xf]
    %v101 = vld [vmem:[#allocation7 + $0x18] sm:$0xf]
    %v102 = vld [vmem:[#allocation7 + $0x1c] sm:$0xf]
    %v103 = vld [vmem:[#allocation7 + $0x20] sm:$0xf]
    %v104 = vld [vmem:[#allocation7 + $0x24] sm:$0xf]
    %v105 = vld [vmem:[#allocation7 + $0x28] sm:$0xf]
    %v106 = vld [vmem:[#allocation7 + $0x2c] sm:$0xf]
    %v107 = vld [vmem:[#allocation7 + $0x30] sm:$0xf]
    %v108 = vld [vmem:[#allocation7 + $0x34] sm:$0xf]
    %v109 = vld [vmem:[#allocation7 + $0x38] sm:$0xf]
    %v110 = vld [vmem:[#allocation7 + $0x3c] sm:$0xf]
    %v127 = vunpack.c.l.b16 %v76
    %v128 = vunpack.c.l.b16 %v77
    %v129 = vunpack.c.l.b16 %v78
    %v130 = vunpack.c.l.b16 %v79
    %v131 = vunpack.c.l.b16 %v80
    %v132 = vunpack.c.l.b16 %v81
    %v133 = vunpack.c.l.b16 %v82
    %v134 = vunpack.c.l.b16 %v83
    %v135 = vunpack.c.l.b16 %v84
    %v136 = vunpack.c.l.b16 %v85
    %v137 = vunpack.c.l.b16 %v86
    %v138 = vunpack.c.l.b16 %v87
    %v139 = vunpack.c.l.b16 %v88
    %v140 = vunpack.c.l.b16 %v89
    %v141 = vunpack.c.l.b16 %v90
    %v142 = vunpack.c.l.b16 %v91
    %v143 = vpack.c.b16 %v128, %v127
    %v144 = vpack.c.b16 %v130, %v129
    %v145 = vpack.c.b16 %v132, %v131
    %v146 = vpack.c.b16 %v134, %v133
    %v147 = vpack.c.b16 %v136, %v135
    %v148 = vpack.c.b16 %v138, %v137
    %v149 = vpack.c.b16 %v140, %v139
    %v150 = vpack.c.b16 %v142, %v141
    %v175 = vunpack.c.l.b16 %v95
    %v176 = vunpack.c.l.b16 %v96
    %v177 = vunpack.c.l.b16 %v97
    %v178 = vunpack.c.l.b16 %v98
    %v179 = vunpack.c.l.b16 %v99
    %v180 = vunpack.c.l.b16 %v100
    %v181 = vunpack.c.l.b16 %v101
    %v182 = vunpack.c.l.b16 %v102
    %v183 = vunpack.c.l.b16 %v103
    %v184 = vunpack.c.l.b16 %v104
    %v185 = vunpack.c.l.b16 %v105
    %v186 = vunpack.c.l.b16 %v106
    %v187 = vunpack.c.l.b16 %v107
    %v188 = vunpack.c.l.b16 %v108
    %v189 = vunpack.c.l.b16 %v109
    %v190 = vunpack.c.l.b16 %v110
    %v191 = vpack.c.b16 %v176, %v175
    %v192 = vpack.c.b16 %v178, %v177
    %v193 = vpack.c.b16 %v180, %v179
    %v194 = vpack.c.b16 %v182, %v181
    %v195 = vpack.c.b16 %v184, %v183
    %v196 = vpack.c.b16 %v186, %v185
    %v197 = vpack.c.b16 %v188, %v187
    %v198 = vpack.c.b16 %v190, %v189
    %207 = vmatprep.subr.bf16.mxu0 0
    %208 = vmatpush1.bf16.msra.mxu0 %v191
    %209 = vmatprep.subr.bf16.mxu0 0
    %210 = vmatpush1.bf16.msra.mxu0 %v192
    %211 = vmatprep.subr.bf16.mxu0 0
    %212 = vmatpush1.bf16.msra.mxu0 %v193
    %213 = vmatprep.subr.bf16.mxu0 0
    %214 = vmatpush1.bf16.msra.mxu0 %v194
    %215 = vmatprep.subr.bf16.mxu0 0
    %216 = vmatpush1.bf16.msra.mxu0 %v195
    %217 = vmatprep.subr.bf16.mxu0 0
    %218 = vmatpush1.bf16.msra.mxu0 %v196
    %219 = vmatprep.subr.bf16.mxu0 0
    %220 = vmatpush1.bf16.msra.mxu0 %v197
    %221 = vmatprep.subr.bf16.mxu0 0
    %222 = vmatpush1.bf16.msra.mxu0 %v198
    %223 = vmatprep.subr.bf16.mxu0 0
    %224 = vmatpush1.bf16.msra.mxu0 0
    %225 = vmatprep.subr.bf16.mxu0 0
    %226 = vmatpush1.bf16.msra.mxu0 0
    %227 = vmatprep.subr.bf16.mxu0 0
    %228 = vmatpush1.bf16.msra.mxu0 0
    %229 = vmatprep.subr.bf16.mxu0 0
    %230 = vmatpush1.bf16.msra.mxu0 0
    %231 = vmatprep.subr.bf16.mxu0 0
    %232 = vmatpush1.bf16.msra.mxu0 0
    %233 = vmatprep.subr.bf16.mxu0 0
    %234 = vmatpush1.bf16.msra.mxu0 0
    %235 = vmatprep.subr.bf16.mxu0 0
    %236 = vmatpush1.bf16.msra.mxu0 0
    %237 = vmatprep.subr.bf16.mxu0 0
    %238 = vmatpush1.bf16.msra.mxu0 0
    %239 = vmatprep.mubr.bf16.mxu0 0
    %240 = vmatmul.mubr.bf16.gmra.mrb[0].mxu0 %v143
    %v241 = vpop.f32.mrb[0].mxu0
    %v242 = vadd.f32 0.0, %v241
    %v243 = vpop.f32.mrb[0].mxu0
    %v244 = vpop.f32.mrb[0].mxu0
    %v245 = vadd.f32 0.0, %v244
    %v246 = vpop.f32.mrb[0].mxu0
    %247 = vmatprep.mubr.bf16.mxu0 0
    %248 = vmatmul.mubr.bf16.gmra.mrb[0].mxu0 %v144
    %v249 = vpop.f32.mrb[0].mxu0
    %v250 = vadd.f32 0.0, %v249
    %v251 = vpop.f32.mrb[0].mxu0
    %v252 = vpop.f32.mrb[0].mxu0
    %v253 = vadd.f32 0.0, %v252
    %v254 = vpop.f32.mrb[0].mxu0
    %255 = vmatprep.mubr.bf16.mxu0 0
    %256 = vmatmul.mubr.bf16.gmra.mrb[0].mxu0 %v145
    %v257 = vpop.f32.mrb[0].mxu0
    %v258 = vadd.f32 0.0, %v257
    %v259 = vpop.f32.mrb[0].mxu0
    %v260 = vpop.f32.mrb[0].mxu0
    %v261 = vadd.f32 0.0, %v260
    %v262 = vpop.f32.mrb[0].mxu0
    %263 = vmatprep.mubr.bf16.mxu0 0
    %264 = vmatmul.mubr.bf16.gmra.mrb[0].mxu0 %v146
    %v265 = vpop.f32.mrb[0].mxu0
    %v266 = vadd.f32 0.0, %v265
    %v267 = vpop.f32.mrb[0].mxu0
    %v268 = vpop.f32.mrb[0].mxu0
    %v269 = vadd.f32 0.0, %v268
    %v270 = vpop.f32.mrb[0].mxu0
    %271 = vmatprep.mubr.bf16.mxu0 0
    %272 = vmatmul.mubr.bf16.gmra.mrb[0].mxu0 %v147
    %v273 = vpop.f32.mrb[0].mxu0
    %v274 = vadd.f32 0.0, %v273
    %v275 = vpop.f32.mrb[0].mxu0
    %v276 = vpop.f32.mrb[0].mxu0
    %v277 = vadd.f32 0.0, %v276
    %v278 = vpop.f32.mrb[0].mxu0
    %279 = vmatprep.mubr.bf16.mxu0 0
    %280 = vmatmul.mubr.bf16.gmra.mrb[0].mxu0 %v148
    %v281 = vpop.f32.mrb[0].mxu0
    %v282 = vadd.f32 0.0, %v281
    %v283 = vpop.f32.mrb[0].mxu0
    %v284 = vpop.f32.mrb[0].mxu0
    %v285 = vadd.f32 0.0, %v284
    %v286 = vpop.f32.mrb[0].mxu0
    %287 = vmatprep.mubr.bf16.mxu0 0
    %288 = vmatmul.mubr.bf16.gmra.mrb[0].mxu0 %v149
    %v289 = vpop.f32.mrb[0].mxu0
    %v290 = vadd.f32 0.0, %v289
    %v291 = vpop.f32.mrb[0].mxu0
    %v292 = vpop.f32.mrb[0].mxu0
    %v293 = vadd.f32 0.0, %v292
    %v294 = vpop.f32.mrb[0].mxu0
    %295 = vmatprep.mubr.bf16.mxu0 0
    %296 = vmatmul.mubr.bf16.gmra.mrb[0].mxu0 %v150
    %v297 = vpop.f32.mrb[0].mxu0
    %v298 = vadd.f32 0.0, %v297
    %v299 = vpop.f32.mrb[0].mxu0
    %v300 = vpop.f32.mrb[0].mxu0
    %v301 = vadd.f32 0.0, %v300
    %v302 = vpop.f32.mrb[0].mxu0
    %303 = vdwg.mxu0
    %v304 = vpack.c.bf16 %v245, %v242
    %v305 = vpack.c.bf16 %v253, %v250
    %v306 = vpack.c.bf16 %v261, %v258
    %v307 = vpack.c.bf16 %v269, %v266
    %v308 = vpack.c.bf16 %v277, %v274
    %v309 = vpack.c.bf16 %v285, %v282
    %v310 = vpack.c.bf16 %v293, %v290
    %v311 = vpack.c.bf16 %v301, %v298
    %v313 = vlaneseq
    %v314 = vshrl.u32 %v313, 7
    %v315 = vsub.s32 0, %v314
    %v316 = vrot.slane %v92, %v315
    %v334 = vunpack.c.l.b16 %v60
    %v335 = vunpack.c.l.b16 %v61
    %v336 = vunpack.c.l.b16 %v62
    %v337 = vunpack.c.l.b16 %v63
    %v338 = vunpack.c.l.b16 %v64
    %v339 = vunpack.c.l.b16 %v65
    %v340 = vunpack.c.l.b16 %v66
    %v341 = vunpack.c.l.b16 %v67
    %v342 = vunpack.c.l.b16 %v68
    %v343 = vunpack.c.l.b16 %v69
    %v344 = vunpack.c.l.b16 %v70
    %v345 = vunpack.c.l.b16 %v71
    %v346 = vunpack.c.l.b16 %v72
    %v347 = vunpack.c.l.b16 %v73
    %v348 = vunpack.c.l.b16 %v74
    %v349 = vunpack.c.l.b16 %v75
    %v350 = vpack.c.b16 %v335, %v334
    %v351 = vpack.c.b16 %v337, %v336
    %v352 = vpack.c.b16 %v339, %v338
    %v353 = vpack.c.b16 %v341, %v340
    %v354 = vpack.c.b16 %v343, %v342
    %v355 = vpack.c.b16 %v345, %v344
    %v356 = vpack.c.b16 %v347, %v346
    %v357 = vpack.c.b16 %v349, %v348
    %366 = vmatprep.subr.bf16.mxu0 0
    %367 = vmatpush1.bf16.msra.mxu0 %v304
    %368 = vmatprep.subr.bf16.mxu0 0
    %369 = vmatpush1.bf16.msra.mxu0 %v305
    %370 = vmatprep.subr.bf16.mxu0 0
    %371 = vmatpush1.bf16.msra.mxu0 %v306
    %372 = vmatprep.subr.bf16.mxu0 0
    %373 = vmatpush1.bf16.msra.mxu0 %v307
    %374 = vmatprep.subr.bf16.mxu0 0
    %375 = vmatpush1.bf16.msra.mxu0 %v308
    %376 = vmatprep.subr.bf16.mxu0 0
    %377 = vmatpush1.bf16.msra.mxu0 %v309
    %378 = vmatprep.subr.bf16.mxu0 0
    %379 = vmatpush1.bf16.msra.mxu0 %v310
    %380 = vmatprep.subr.bf16.mxu0 0
    %381 = vmatpush1.bf16.msra.mxu0 %v311
    %382 = vmatprep.subr.bf16.mxu0 0
    %383 = vmatpush1.bf16.msra.mxu0 0
    %384 = vmatprep.subr.bf16.mxu0 0
    %385 = vmatpush1.bf16.msra.mxu0 0
    %386 = vmatprep.subr.bf16.mxu0 0
    %387 = vmatpush1.bf16.msra.mxu0 0
    %388 = vmatprep.subr.bf16.mxu0 0
    %389 = vmatpush1.bf16.msra.mxu0 0
    %390 = vmatprep.subr.bf16.mxu0 0
    %391 = vmatpush1.bf16.msra.mxu0 0
    %392 = vmatprep.subr.bf16.mxu0 0
    %393 = vmatpush1.bf16.msra.mxu0 0
    %394 = vmatprep.subr.bf16.mxu0 0
    %395 = vmatpush1.bf16.msra.mxu0 0
    %396 = vmatprep.subr.bf16.mxu0 0
    %397 = vmatpush1.bf16.msra.mxu0 0
    %398 = vmatprep.mubr.bf16.mxu0 0
    %399 = vmatmul.mubr.bf16.gmra.mrb[0].mxu0 %v350
    %v400 = vpop.f32.mrb[0].mxu0
    %v401 = vadd.f32 %v316, %v400
    %v402 = vpop.f32.mrb[0].mxu0
    %v403 = vpop.f32.mrb[0].mxu0
    %v404 = vadd.f32 %v316, %v403
    %v405 = vpop.f32.mrb[0].mxu0
    %406 = vmatprep.mubr.bf16.mxu0 0
    %407 = vmatmul.mubr.bf16.gmra.mrb[0].mxu0 %v351
    %v408 = vpop.f32.mrb[0].mxu0
    %v409 = vadd.f32 %v316, %v408
    %v410 = vpop.f32.mrb[0].mxu0
    %v411 = vpop.f32.mrb[0].mxu0
    %v412 = vadd.f32 %v316, %v411
    %v413 = vpop.f32.mrb[0].mxu0
    %414 = vmatprep.mubr.bf16.mxu0 0
    %415 = vmatmul.mubr.bf16.gmra.mrb[0].mxu0 %v352
    %v416 = vpop.f32.mrb[0].mxu0
    %v417 = vadd.f32 %v316, %v416
    %v418 = vpop.f32.mrb[0].mxu0
    %v419 = vpop.f32.mrb[0].mxu0
    %v420 = vadd.f32 %v316, %v419
    %v421 = vpop.f32.mrb[0].mxu0
    %422 = vmatprep.mubr.bf16.mxu0 0
    %423 = vmatmul.mubr.bf16.gmra.mrb[0].mxu0 %v353
    %v424 = vpop.f32.mrb[0].mxu0
    %v425 = vadd.f32 %v316, %v424
    %v426 = vpop.f32.mrb[0].mxu0
    %v427 = vpop.f32.mrb[0].mxu0
    %v428 = vadd.f32 %v316, %v427
    %v429 = vpop.f32.mrb[0].mxu0
    %430 = vmatprep.mubr.bf16.mxu0 0
    %431 = vmatmul.mubr.bf16.gmra.mrb[0].mxu0 %v354
    %v432 = vpop.f32.mrb[0].mxu0
    %v433 = vadd.f32 %v316, %v432
    %v434 = vpop.f32.mrb[0].mxu0
    %v435 = vpop.f32.mrb[0].mxu0
    %v436 = vadd.f32 %v316, %v435
    %v437 = vpop.f32.mrb[0].mxu0
    %438 = vmatprep.mubr.bf16.mxu0 0
    %439 = vmatmul.mubr.bf16.gmra.mrb[0].mxu0 %v355
    %v440 = vpop.f32.mrb[0].mxu0
    %v441 = vadd.f32 %v316, %v440
    %v442 = vpop.f32.mrb[0].mxu0
    %v443 = vpop.f32.mrb[0].mxu0
    %v444 = vadd.f32 %v316, %v443
    %v445 = vpop.f32.mrb[0].mxu0
    %446 = vmatprep.mubr.bf16.mxu0 0
    %447 = vmatmul.mubr.bf16.gmra.mrb[0].mxu0 %v356
    %v448 = vpop.f32.mrb[0].mxu0
    %v449 = vadd.f32 %v316, %v448
    %v450 = vpop.f32.mrb[0].mxu0
    %v451 = vpop.f32.mrb[0].mxu0
    %v452 = vadd.f32 %v316, %v451
    %v453 = vpop.f32.mrb[0].mxu0
    %454 = vmatprep.mubr.bf16.mxu0 0
    %455 = vmatmul.mubr.bf16.gmra.mrb[0].mxu0 %v357
    %v456 = vpop.f32.mrb[0].mxu0
    %v457 = vadd.f32 %v316, %v456
    %v458 = vpop.f32.mrb[0].mxu0
    %v459 = vpop.f32.mrb[0].mxu0
    %v460 = vadd.f32 %v316, %v459
    %v461 = vpop.f32.mrb[0].mxu0
    %462 = vdwg.mxu0
    %v463 = vmax.f32 %v401, 0.0
    %v464 = vmax.f32 %v404, 0.0
    %v465 = vmax.f32 %v409, 0.0
    %v466 = vmax.f32 %v412, 0.0
    %v467 = vmax.f32 %v417, 0.0
    %v468 = vmax.f32 %v420, 0.0
    %v469 = vmax.f32 %v425, 0.0
    %v470 = vmax.f32 %v428, 0.0
    %v471 = vmax.f32 %v433, 0.0
    %v472 = vmax.f32 %v436, 0.0
    %v473 = vmax.f32 %v441, 0.0
    %v474 = vmax.f32 %v444, 0.0
    %v475 = vmax.f32 %v449, 0.0
    %v476 = vmax.f32 %v452, 0.0
    %v477 = vmax.f32 %v457, 0.0
    %v478 = vmax.f32 %v460, 0.0
    %v479 = vpack.c.bf16 %v464, %v463
    %v480 = vpack.c.bf16 %v466, %v465
    %v481 = vpack.c.bf16 %v468, %v467
    %v482 = vpack.c.bf16 %v470, %v469
    %v483 = vpack.c.bf16 %v472, %v471
    %v484 = vpack.c.bf16 %v474, %v473
    %v485 = vpack.c.bf16 %v476, %v475
    %v486 = vpack.c.bf16 %v478, %v477
    %s487 = scalar_lea.vmem [#allocation7], 64
    %v488 = vld [vmem:[%s487] sm:$0xf]
    %v489 = vld [vmem:[%s487 + $0x4] sm:$0xf]
    %v490 = vld [vmem:[%s487 + $0x8] sm:$0xf]
    %v491 = vld [vmem:[%s487 + $0xc] sm:$0xf]
    %v492 = vld [vmem:[%s487 + $0x10] sm:$0xf]
    %v493 = vld [vmem:[%s487 + $0x14] sm:$0xf]
    %v494 = vld [vmem:[%s487 + $0x18] sm:$0xf]
    %v495 = vld [vmem:[%s487 + $0x1c] sm:$0xf]
    %v496 = vld [vmem:[%s487 + $0x20] sm:$0xf]
    %v497 = vld [vmem:[%s487 + $0x24] sm:$0xf]
    %v498 = vld [vmem:[%s487 + $0x28] sm:$0xf]
    %v499 = vld [vmem:[%s487 + $0x2c] sm:$0xf]
    %v500 = vld [vmem:[%s487 + $0x30] sm:$0xf]
    %v501 = vld [vmem:[%s487 + $0x34] sm:$0xf]
    %v502 = vld [vmem:[%s487 + $0x38] sm:$0xf]
    %v503 = vld [vmem:[%s487 + $0x3c] sm:$0xf]
    %v520 = vunpack.c.l.b16 %v488
    %v521 = vunpack.c.l.b16 %v489
    %v522 = vunpack.c.l.b16 %v490
    %v523 = vunpack.c.l.b16 %v491
    %v524 = vunpack.c.l.b16 %v492
    %v525 = vunpack.c.l.b16 %v493
    %v526 = vunpack.c.l.b16 %v494
    %v527 = vunpack.c.l.b16 %v495
    %v528 = vunpack.c.l.b16 %v496
    %v529 = vunpack.c.l.b16 %v497
    %v530 = vunpack.c.l.b16 %v498
    %v531 = vunpack.c.l.b16 %v499
    %v532 = vunpack.c.l.b16 %v500
    %v533 = vunpack.c.l.b16 %v501
    %v534 = vunpack.c.l.b16 %v502
    %v535 = vunpack.c.l.b16 %v503
    %v536 = vpack.c.b16 %v521, %v520
    %v537 = vpack.c.b16 %v523, %v522
    %v538 = vpack.c.b16 %v525, %v524
    %v539 = vpack.c.b16 %v527, %v526
    %v540 = vpack.c.b16 %v529, %v528
    %v541 = vpack.c.b16 %v531, %v530
    %v542 = vpack.c.b16 %v533, %v532
    %v543 = vpack.c.b16 %v535, %v534
    %552 = vmatprep.subr.bf16.mxu0 0
    %553 = vmatpush1.bf16.msra.mxu0 %v536
    %554 = vmatprep.subr.bf16.mxu0 0
    %555 = vmatpush1.bf16.msra.mxu0 %v537
    %556 = vmatprep.subr.bf16.mxu0 0
    %557 = vmatpush1.bf16.msra.mxu0 %v538
    %558 = vmatprep.subr.bf16.mxu0 0
    %559 = vmatpush1.bf16.msra.mxu0 %v539
    %560 = vmatprep.subr.bf16.mxu0 0
    %561 = vmatpush1.bf16.msra.mxu0 %v540
    %562 = vmatprep.subr.bf16.mxu0 0
    %563 = vmatpush1.bf16.msra.mxu0 %v541
    %564 = vmatprep.subr.bf16.mxu0 0
    %565 = vmatpush1.bf16.msra.mxu0 %v542
    %566 = vmatprep.subr.bf16.mxu0 0
    %567 = vmatpush1.bf16.msra.mxu0 %v543
    %568 = vmatprep.subr.bf16.mxu0 0
    %569 = vmatpush1.bf16.msra.mxu0 0
    %570 = vmatprep.subr.bf16.mxu0 0
    %571 = vmatpush1.bf16.msra.mxu0 0
    %572 = vmatprep.subr.bf16.mxu0 0
    %573 = vmatpush1.bf16.msra.mxu0 0
    %574 = vmatprep.subr.bf16.mxu0 0
    %575 = vmatpush1.bf16.msra.mxu0 0
    %576 = vmatprep.subr.bf16.mxu0 0
    %577 = vmatpush1.bf16.msra.mxu0 0
    %578 = vmatprep.subr.bf16.mxu0 0
    %579 = vmatpush1.bf16.msra.mxu0 0
    %580 = vmatprep.subr.bf16.mxu0 0
    %581 = vmatpush1.bf16.msra.mxu0 0
    %582 = vmatprep.subr.bf16.mxu0 0
    %583 = vmatpush1.bf16.msra.mxu0 0
    %584 = vmatprep.mubr.bf16.mxu0 0
    %585 = vmatmul.mubr.bf16.gmra.mrb[0].mxu0 %v479
    %v586 = vpop.f32.mrb[0].mxu0
    %v587 = vadd.f32 0.0, %v586
    %v588 = vpop.f32.mrb[0].mxu0
    %v589 = vpop.f32.mrb[0].mxu0
    %v590 = vadd.f32 0.0, %v589
    %v591 = vpop.f32.mrb[0].mxu0
    %592 = vmatprep.mubr.bf16.mxu0 0
    %593 = vmatmul.mubr.bf16.gmra.mrb[0].mxu0 %v480
    %v594 = vpop.f32.mrb[0].mxu0
    %v595 = vadd.f32 0.0, %v594
    %v596 = vpop.f32.mrb[0].mxu0
    %v597 = vpop.f32.mrb[0].mxu0
    %v598 = vadd.f32 0.0, %v597
    %v599 = vpop.f32.mrb[0].mxu0
    %600 = vmatprep.mubr.bf16.mxu0 0
    %601 = vmatmul.mubr.bf16.gmra.mrb[0].mxu0 %v481
    %v602 = vpop.f32.mrb[0].mxu0
    %v603 = vadd.f32 0.0, %v602
    %v604 = vpop.f32.mrb[0].mxu0
    %v605 = vpop.f32.mrb[0].mxu0
    %v606 = vadd.f32 0.0, %v605
    %v607 = vpop.f32.mrb[0].mxu0
    %608 = vmatprep.mubr.bf16.mxu0 0
    %609 = vmatmul.mubr.bf16.gmra.mrb[0].mxu0 %v482
    %v610 = vpop.f32.mrb[0].mxu0
    %v611 = vadd.f32 0.0, %v610
    %v612 = vpop.f32.mrb[0].mxu0
    %v613 = vpop.f32.mrb[0].mxu0
    %v614 = vadd.f32 0.0, %v613
    %v615 = vpop.f32.mrb[0].mxu0
    %616 = vmatprep.mubr.bf16.mxu0 0
    %617 = vmatmul.mubr.bf16.gmra.mrb[0].mxu0 %v483
    %v618 = vpop.f32.mrb[0].mxu0
    %v619 = vadd.f32 0.0, %v618
    %v620 = vpop.f32.mrb[0].mxu0
    %v621 = vpop.f32.mrb[0].mxu0
    %v622 = vadd.f32 0.0, %v621
    %v623 = vpop.f32.mrb[0].mxu0
    %624 = vmatprep.mubr.bf16.mxu0 0
    %625 = vmatmul.mubr.bf16.gmra.mrb[0].mxu0 %v484
    %v626 = vpop.f32.mrb[0].mxu0
    %v627 = vadd.f32 0.0, %v626
    %v628 = vpop.f32.mrb[0].mxu0
    %v629 = vpop.f32.mrb[0].mxu0
    %v630 = vadd.f32 0.0, %v629
    %v631 = vpop.f32.mrb[0].mxu0
    %632 = vmatprep.mubr.bf16.mxu0 0
    %633 = vmatmul.mubr.bf16.gmra.mrb[0].mxu0 %v485
    %v634 = vpop.f32.mrb[0].mxu0
    %v635 = vadd.f32 0.0, %v634
    %v636 = vpop.f32.mrb[0].mxu0
    %v637 = vpop.f32.mrb[0].mxu0
    %v638 = vadd.f32 0.0, %v637
    %v639 = vpop.f32.mrb[0].mxu0
    %640 = vmatprep.mubr.bf16.mxu0 0
    %641 = vmatmul.mubr.bf16.gmra.mrb[0].mxu0 %v486
    %v642 = vpop.f32.mrb[0].mxu0
    %v643 = vadd.f32 0.0, %v642
    %v644 = vpop.f32.mrb[0].mxu0
    %v645 = vpop.f32.mrb[0].mxu0
    %v646 = vadd.f32 0.0, %v645
    %v647 = vpop.f32.mrb[0].mxu0
    %648 = vdwg.mxu0
    %v649 = vpack.c.bf16 %v590, %v587
    %v650 = vpack.c.bf16 %v598, %v595
    %v651 = vpack.c.bf16 %v606, %v603
    %v652 = vpack.c.bf16 %v614, %v611
    %v653 = vpack.c.bf16 %v622, %v619
    %v654 = vpack.c.bf16 %v630, %v627
    %v655 = vpack.c.bf16 %v638, %v635
    %v656 = vpack.c.bf16 %v646, %v643
    %v658 = vlaneseq
    %v659 = vshrl.u32 %v658, 7
    %v660 = vsub.s32 0, %v659
    %v661 = vrot.slane %v93, %v660
    %663 = vmatprep.subr.bf16.mxu0 0
    %664 = vmatpush1.bf16.msra.mxu0 %v649
    %665 = vmatprep.subr.bf16.mxu0 0
    %666 = vmatpush1.bf16.msra.mxu0 %v650
    %667 = vmatprep.subr.bf16.mxu0 0
    %668 = vmatpush1.bf16.msra.mxu0 %v651
    %669 = vmatprep.subr.bf16.mxu0 0
    %670 = vmatpush1.bf16.msra.mxu0 %v652
    %671 = vmatprep.subr.bf16.mxu0 0
    %672 = vmatpush1.bf16.msra.mxu0 %v653
    %673 = vmatprep.subr.bf16.mxu0 0
    %674 = vmatpush1.bf16.msra.mxu0 %v654
    %675 = vmatprep.subr.bf16.mxu0 0
    %676 = vmatpush1.bf16.msra.mxu0 %v655
    %677 = vmatprep.subr.bf16.mxu0 0
    %678 = vmatpush1.bf16.msra.mxu0 %v656
    %679 = vmatprep.subr.bf16.mxu0 0
    %680 = vmatpush1.bf16.msra.mxu0 0
    %681 = vmatprep.subr.bf16.mxu0 0
    %682 = vmatpush1.bf16.msra.mxu0 0
    %683 = vmatprep.subr.bf16.mxu0 0
    %684 = vmatpush1.bf16.msra.mxu0 0
    %685 = vmatprep.subr.bf16.mxu0 0
    %686 = vmatpush1.bf16.msra.mxu0 0
    %687 = vmatprep.subr.bf16.mxu0 0
    %688 = vmatpush1.bf16.msra.mxu0 0
    %689 = vmatprep.subr.bf16.mxu0 0
    %690 = vmatpush1.bf16.msra.mxu0 0
    %691 = vmatprep.subr.bf16.mxu0 0
    %692 = vmatpush1.bf16.msra.mxu0 0
    %693 = vmatprep.subr.bf16.mxu0 0
    %694 = vmatpush1.bf16.msra.mxu0 0
    %695 = vmatprep.mubr.bf16.mxu0 0
    %696 = vmatmul.mubr.bf16.gmra.mrb[0].mxu0 %v350
    %v697 = vpop.f32.mrb[0].mxu0
    %v698 = vadd.f32 %v661, %v697
    %v699 = vpop.f32.mrb[0].mxu0
    %v700 = vpop.f32.mrb[0].mxu0
    %v701 = vadd.f32 %v661, %v700
    %v702 = vpop.f32.mrb[0].mxu0
    %703 = vmatprep.mubr.bf16.mxu0 0
    %704 = vmatmul.mubr.bf16.gmra.mrb[0].mxu0 %v351
    %v705 = vpop.f32.mrb[0].mxu0
    %v706 = vadd.f32 %v661, %v705
    %v707 = vpop.f32.mrb[0].mxu0
    %v708 = vpop.f32.mrb[0].mxu0
    %v709 = vadd.f32 %v661, %v708
    %v710 = vpop.f32.mrb[0].mxu0
    %711 = vmatprep.mubr.bf16.mxu0 0
    %712 = vmatmul.mubr.bf16.gmra.mrb[0].mxu0 %v352
    %v713 = vpop.f32.mrb[0].mxu0
    %v714 = vadd.f32 %v661, %v713
    %v715 = vpop.f32.mrb[0].mxu0
    %v716 = vpop.f32.mrb[0].mxu0
    %v717 = vadd.f32 %v661, %v716
    %v718 = vpop.f32.mrb[0].mxu0
    %719 = vmatprep.mubr.bf16.mxu0 0
    %720 = vmatmul.mubr.bf16.gmra.mrb[0].mxu0 %v353
    %v721 = vpop.f32.mrb[0].mxu0
    %v722 = vadd.f32 %v661, %v721
    %v723 = vpop.f32.mrb[0].mxu0
    %v724 = vpop.f32.mrb[0].mxu0
    %v725 = vadd.f32 %v661, %v724
    %v726 = vpop.f32.mrb[0].mxu0
    %727 = vmatprep.mubr.bf16.mxu0 0
    %728 = vmatmul.mubr.bf16.gmra.mrb[0].mxu0 %v354
    %v729 = vpop.f32.mrb[0].mxu0
    %v730 = vadd.f32 %v661, %v729
    %v731 = vpop.f32.mrb[0].mxu0
    %v732 = vpop.f32.mrb[0].mxu0
    %v733 = vadd.f32 %v661, %v732
    %v734 = vpop.f32.mrb[0].mxu0
    %735 = vmatprep.mubr.bf16.mxu0 0
    %736 = vmatmul.mubr.bf16.gmra.mrb[0].mxu0 %v355
    %v737 = vpop.f32.mrb[0].mxu0
    %v738 = vadd.f32 %v661, %v737
    %v739 = vpop.f32.mrb[0].mxu0
    %v740 = vpop.f32.mrb[0].mxu0
    %v741 = vadd.f32 %v661, %v740
    %v742 = vpop.f32.mrb[0].mxu0
    %743 = vmatprep.mubr.bf16.mxu0 0
    %744 = vmatmul.mubr.bf16.gmra.mrb[0].mxu0 %v356
    %v745 = vpop.f32.mrb[0].mxu0
    %v746 = vadd.f32 %v661, %v745
    %v747 = vpop.f32.mrb[0].mxu0
    %v748 = vpop.f32.mrb[0].mxu0
    %v749 = vadd.f32 %v661, %v748
    %v750 = vpop.f32.mrb[0].mxu0
    %751 = vmatprep.mubr.bf16.mxu0 0
    %752 = vmatmul.mubr.bf16.gmra.mrb[0].mxu0 %v357
    %v753 = vpop.f32.mrb[0].mxu0
    %v754 = vadd.f32 %v661, %v753
    %v755 = vpop.f32.mrb[0].mxu0
    %v756 = vpop.f32.mrb[0].mxu0
    %v757 = vadd.f32 %v661, %v756
    %v758 = vpop.f32.mrb[0].mxu0
    %759 = vdwg.mxu0
    %v760 = vmax.f32 %v698, 0.0
    %v761 = vmax.f32 %v701, 0.0
    %v762 = vmax.f32 %v706, 0.0
    %v763 = vmax.f32 %v709, 0.0
    %v764 = vmax.f32 %v714, 0.0
    %v765 = vmax.f32 %v717, 0.0
    %v766 = vmax.f32 %v722, 0.0
    %v767 = vmax.f32 %v725, 0.0
    %v768 = vmax.f32 %v730, 0.0
    %v769 = vmax.f32 %v733, 0.0
    %v770 = vmax.f32 %v738, 0.0
    %v771 = vmax.f32 %v741, 0.0
    %v772 = vmax.f32 %v746, 0.0
    %v773 = vmax.f32 %v749, 0.0
    %v774 = vmax.f32 %v754, 0.0
    %v775 = vmax.f32 %v757, 0.0
    %v776 = vpack.c.bf16 %v761, %v760
    %v777 = vpack.c.bf16 %v763, %v762
    %v778 = vpack.c.bf16 %v765, %v764
    %v779 = vpack.c.bf16 %v767, %v766
    %v780 = vpack.c.bf16 %v769, %v768
    %v781 = vpack.c.bf16 %v771, %v770
    %v782 = vpack.c.bf16 %v773, %v772
    %v783 = vpack.c.bf16 %v775, %v774
    %s784 = scalar_lea.vmem [#allocation7], 128
    %v785 = vld [vmem:[%s784] sm:$0xf]
    %v786 = vld [vmem:[%s784 + $0x4] sm:$0xf]
    %v787 = vld [vmem:[%s784 + $0x8] sm:$0xf]
    %v788 = vld [vmem:[%s784 + $0xc] sm:$0xf]
    %v789 = vld [vmem:[%s784 + $0x10] sm:$0xf]
    %v790 = vld [vmem:[%s784 + $0x14] sm:$0xf]
    %v791 = vld [vmem:[%s784 + $0x18] sm:$0xf]
    %v792 = vld [vmem:[%s784 + $0x1c] sm:$0xf]
    %v793 = vld [vmem:[%s784 + $0x20] sm:$0xf]
    %v794 = vld [vmem:[%s784 + $0x24] sm:$0xf]
    %v795 = vld [vmem:[%s784 + $0x28] sm:$0xf]
    %v796 = vld [vmem:[%s784 + $0x2c] sm:$0xf]
    %v797 = vld [vmem:[%s784 + $0x30] sm:$0xf]
    %v798 = vld [vmem:[%s784 + $0x34] sm:$0xf]
    %v799 = vld [vmem:[%s784 + $0x38] sm:$0xf]
    %v800 = vld [vmem:[%s784 + $0x3c] sm:$0xf]
    %v817 = vunpack.c.l.b16 %v785
    %v818 = vunpack.c.l.b16 %v786
    %v819 = vunpack.c.l.b16 %v787
    %v820 = vunpack.c.l.b16 %v788
    %v821 = vunpack.c.l.b16 %v789
    %v822 = vunpack.c.l.b16 %v790
    %v823 = vunpack.c.l.b16 %v791
    %v824 = vunpack.c.l.b16 %v792
    %v825 = vunpack.c.l.b16 %v793
    %v826 = vunpack.c.l.b16 %v794
    %v827 = vunpack.c.l.b16 %v795
    %v828 = vunpack.c.l.b16 %v796
    %v829 = vunpack.c.l.b16 %v797
    %v830 = vunpack.c.l.b16 %v798
    %v831 = vunpack.c.l.b16 %v799
    %v832 = vunpack.c.l.b16 %v800
    %v833 = vpack.c.b16 %v818, %v817
    %v834 = vpack.c.b16 %v820, %v819
    %v835 = vpack.c.b16 %v822, %v821
    %v836 = vpack.c.b16 %v824, %v823
    %v837 = vpack.c.b16 %v826, %v825
    %v838 = vpack.c.b16 %v828, %v827
    %v839 = vpack.c.b16 %v830, %v829
    %v840 = vpack.c.b16 %v832, %v831
    %849 = vmatprep.subr.bf16.mxu0 0
    %850 = vmatpush1.bf16.msra.mxu0 %v833
    %851 = vmatprep.subr.bf16.mxu0 0
    %852 = vmatpush1.bf16.msra.mxu0 %v834
    %853 = vmatprep.subr.bf16.mxu0 0
    %854 = vmatpush1.bf16.msra.mxu0 %v835
    %855 = vmatprep.subr.bf16.mxu0 0
    %856 = vmatpush1.bf16.msra.mxu0 %v836
    %857 = vmatprep.subr.bf16.mxu0 0
    %858 = vmatpush1.bf16.msra.mxu0 %v837
    %859 = vmatprep.subr.bf16.mxu0 0
    %860 = vmatpush1.bf16.msra.mxu0 %v838
    %861 = vmatprep.subr.bf16.mxu0 0
    %862 = vmatpush1.bf16.msra.mxu0 %v839
    %863 = vmatprep.subr.bf16.mxu0 0
    %864 = vmatpush1.bf16.msra.mxu0 %v840
    %865 = vmatprep.subr.bf16.mxu0 0
    %866 = vmatpush1.bf16.msra.mxu0 0
    %867 = vmatprep.subr.bf16.mxu0 0
    %868 = vmatpush1.bf16.msra.mxu0 0
    %869 = vmatprep.subr.bf16.mxu0 0
    %870 = vmatpush1.bf16.msra.mxu0 0
    %871 = vmatprep.subr.bf16.mxu0 0
    %872 = vmatpush1.bf16.msra.mxu0 0
    %873 = vmatprep.subr.bf16.mxu0 0
    %874 = vmatpush1.bf16.msra.mxu0 0
    %875 = vmatprep.subr.bf16.mxu0 0
    %876 = vmatpush1.bf16.msra.mxu0 0
    %877 = vmatprep.subr.bf16.mxu0 0
    %878 = vmatpush1.bf16.msra.mxu0 0
    %879 = vmatprep.subr.bf16.mxu0 0
    %880 = vmatpush1.bf16.msra.mxu0 0
    %881 = vmatprep.mubr.bf16.mxu0 0
    %882 = vmatmul.mubr.bf16.gmra.mrb[0].mxu0 %v776
    %v883 = vpop.f32.mrb[0].mxu0
    %v884 = vadd.f32 0.0, %v883
    %v885 = vpop.f32.mrb[0].mxu0
    %v886 = vpop.f32.mrb[0].mxu0
    %v887 = vadd.f32 0.0, %v886
    %v888 = vpop.f32.mrb[0].mxu0
    %889 = vmatprep.mubr.bf16.mxu0 0
    %890 = vmatmul.mubr.bf16.gmra.mrb[0].mxu0 %v777
    %v891 = vpop.f32.mrb[0].mxu0
    %v892 = vadd.f32 0.0, %v891
    %v893 = vpop.f32.mrb[0].mxu0
    %v894 = vpop.f32.mrb[0].mxu0
    %v895 = vadd.f32 0.0, %v894
    %v896 = vpop.f32.mrb[0].mxu0
    %897 = vmatprep.mubr.bf16.mxu0 0
    %898 = vmatmul.mubr.bf16.gmra.mrb[0].mxu0 %v778
    %v899 = vpop.f32.mrb[0].mxu0
    %v900 = vadd.f32 0.0, %v899
    %v901 = vpop.f32.mrb[0].mxu0
    %v902 = vpop.f32.mrb[0].mxu0
    %v903 = vadd.f32 0.0, %v902
    %v904 = vpop.f32.mrb[0].mxu0
    %905 = vmatprep.mubr.bf16.mxu0 0
    %906 = vmatmul.mubr.bf16.gmra.mrb[0].mxu0 %v779
    %v907 = vpop.f32.mrb[0].mxu0
    %v908 = vadd.f32 0.0, %v907
    %v909 = vpop.f32.mrb[0].mxu0
    %v910 = vpop.f32.mrb[0].mxu0
    %v911 = vadd.f32 0.0, %v910
    %v912 = vpop.f32.mrb[0].mxu0
    %913 = vmatprep.mubr.bf16.mxu0 0
    %914 = vmatmul.mubr.bf16.gmra.mrb[0].mxu0 %v780
    %v915 = vpop.f32.mrb[0].mxu0
    %v916 = vadd.f32 0.0, %v915
    %v917 = vpop.f32.mrb[0].mxu0
    %v918 = vpop.f32.mrb[0].mxu0
    %v919 = vadd.f32 0.0, %v918
    %v920 = vpop.f32.mrb[0].mxu0
    %921 = vmatprep.mubr.bf16.mxu0 0
    %922 = vmatmul.mubr.bf16.gmra.mrb[0].mxu0 %v781
    %v923 = vpop.f32.mrb[0].mxu0
    %v924 = vadd.f32 0.0, %v923
    %v925 = vpop.f32.mrb[0].mxu0
    %v926 = vpop.f32.mrb[0].mxu0
    %v927 = vadd.f32 0.0, %v926
    %v928 = vpop.f32.mrb[0].mxu0
    %929 = vmatprep.mubr.bf16.mxu0 0
    %930 = vmatmul.mubr.bf16.gmra.mrb[0].mxu0 %v782
    %v931 = vpop.f32.mrb[0].mxu0
    %v932 = vadd.f32 0.0, %v931
    %v933 = vpop.f32.mrb[0].mxu0
    %v934 = vpop.f32.mrb[0].mxu0
    %v935 = vadd.f32 0.0, %v934
    %v936 = vpop.f32.mrb[0].mxu0
    %937 = vmatprep.mubr.bf16.mxu0 0
    %938 = vmatmul.mubr.bf16.gmra.mrb[0].mxu0 %v783
    %v939 = vpop.f32.mrb[0].mxu0
    %v940 = vadd.f32 0.0, %v939
    %v941 = vpop.f32.mrb[0].mxu0
    %v942 = vpop.f32.mrb[0].mxu0
    %v943 = vadd.f32 0.0, %v942
    %v944 = vpop.f32.mrb[0].mxu0
    %945 = vdwg.mxu0
    %v946 = vpack.c.bf16 %v887, %v884
    %v947 = vpack.c.bf16 %v895, %v892
    %v948 = vpack.c.bf16 %v903, %v900
    %v949 = vpack.c.bf16 %v911, %v908
    %v950 = vpack.c.bf16 %v919, %v916
    %v951 = vpack.c.bf16 %v927, %v924
    %v952 = vpack.c.bf16 %v935, %v932
    %v953 = vpack.c.bf16 %v943, %v940
    %v955 = vlaneseq
    %v956 = vshrl.u32 %v955, 7
    %v957 = vsub.s32 0, %v956
    %v958 = vrot.slane %v94, %v957
    %960 = vmatprep.subr.bf16.mxu0 0
    %961 = vmatpush1.bf16.msra.mxu0 %v946
    %962 = vmatprep.subr.bf16.mxu0 0
    %963 = vmatpush1.bf16.msra.mxu0 %v947
    %964 = vmatprep.subr.bf16.mxu0 0
    %965 = vmatpush1.bf16.msra.mxu0 %v948
    %966 = vmatprep.subr.bf16.mxu0 0
    %967 = vmatpush1.bf16.msra.mxu0 %v949
    %968 = vmatprep.subr.bf16.mxu0 0
    %969 = vmatpush1.bf16.msra.mxu0 %v950
    %970 = vmatprep.subr.bf16.mxu0 0
    %971 = vmatpush1.bf16.msra.mxu0 %v951
    %972 = vmatprep.subr.bf16.mxu0 0
    %973 = vmatpush1.bf16.msra.mxu0 %v952
    %974 = vmatprep.subr.bf16.mxu0 0
    %975 = vmatpush1.bf16.msra.mxu0 %v953
    %976 = vmatprep.subr.bf16.mxu0 0
    %977 = vmatpush1.bf16.msra.mxu0 0
    %978 = vmatprep.subr.bf16.mxu0 0
    %979 = vmatpush1.bf16.msra.mxu0 0
    %980 = vmatprep.subr.bf16.mxu0 0
    %981 = vmatpush1.bf16.msra.mxu0 0
    %982 = vmatprep.subr.bf16.mxu0 0
    %983 = vmatpush1.bf16.msra.mxu0 0
    %984 = vmatprep.subr.bf16.mxu0 0
    %985 = vmatpush1.bf16.msra.mxu0 0
    %986 = vmatprep.subr.bf16.mxu0 0
    %987 = vmatpush1.bf16.msra.mxu0 0
    %988 = vmatprep.subr.bf16.mxu0 0
    %989 = vmatpush1.bf16.msra.mxu0 0
    %990 = vmatprep.subr.bf16.mxu0 0
    %991 = vmatpush1.bf16.msra.mxu0 0
    %992 = vmatprep.mubr.bf16.mxu0 0
    %993 = vmatmul.mubr.bf16.gmra.mrb[0].mxu0 %v350
    %v994 = vpop.f32.mrb[0].mxu0
    %v995 = vadd.f32 %v958, %v994
    %v996 = vpop.f32.mrb[0].mxu0
    %v997 = vpop.f32.mrb[0].mxu0
    %v998 = vadd.f32 %v958, %v997
    %v999 = vpop.f32.mrb[0].mxu0
    %1000 = vmatprep.mubr.bf16.mxu0 0
    %1001 = vmatmul.mubr.bf16.gmra.mrb[0].mxu0 %v351
    %v1002 = vpop.f32.mrb[0].mxu0
    %v1003 = vadd.f32 %v958, %v1002
    %v1004 = vpop.f32.mrb[0].mxu0
    %v1005 = vpop.f32.mrb[0].mxu0
    %v1006 = vadd.f32 %v958, %v1005
    %v1007 = vpop.f32.mrb[0].mxu0
    %1008 = vmatprep.mubr.bf16.mxu0 0
    %1009 = vmatmul.mubr.bf16.gmra.mrb[0].mxu0 %v352
    %v1010 = vpop.f32.mrb[0].mxu0
    %v1011 = vadd.f32 %v958, %v1010
    %v1012 = vpop.f32.mrb[0].mxu0
    %v1013 = vpop.f32.mrb[0].mxu0
    %v1014 = vadd.f32 %v958, %v1013
    %v1015 = vpop.f32.mrb[0].mxu0
    %1016 = vmatprep.mubr.bf16.mxu0 0
    %1017 = vmatmul.mubr.bf16.gmra.mrb[0].mxu0 %v353
    %v1018 = vpop.f32.mrb[0].mxu0
    %v1019 = vadd.f32 %v958, %v1018
    %v1020 = vpop.f32.mrb[0].mxu0
    %v1021 = vpop.f32.mrb[0].mxu0
    %v1022 = vadd.f32 %v958, %v1021
    %v1023 = vpop.f32.mrb[0].mxu0
    %1024 = vmatprep.mubr.bf16.mxu0 0
    %1025 = vmatmul.mubr.bf16.gmra.mrb[0].mxu0 %v354
    %v1026 = vpop.f32.mrb[0].mxu0
    %v1027 = vadd.f32 %v958, %v1026
    %v1028 = vpop.f32.mrb[0].mxu0
    %v1029 = vpop.f32.mrb[0].mxu0
    %v1030 = vadd.f32 %v958, %v1029
    %v1031 = vpop.f32.mrb[0].mxu0
    %1032 = vmatprep.mubr.bf16.mxu0 0
    %1033 = vmatmul.mubr.bf16.gmra.mrb[0].mxu0 %v355
    %v1034 = vpop.f32.mrb[0].mxu0
    %v1035 = vadd.f32 %v958, %v1034
    %v1036 = vpop.f32.mrb[0].mxu0
    %v1037 = vpop.f32.mrb[0].mxu0
    %v1038 = vadd.f32 %v958, %v1037
    %v1039 = vpop.f32.mrb[0].mxu0
    %1040 = vmatprep.mubr.bf16.mxu0 0
    %1041 = vmatmul.mubr.bf16.gmra.mrb[0].mxu0 %v356
    %v1042 = vpop.f32.mrb[0].mxu0
    %v1043 = vadd.f32 %v958, %v1042
    %v1044 = vpop.f32.mrb[0].mxu0
    %v1045 = vpop.f32.mrb[0].mxu0
    %v1046 = vadd.f32 %v958, %v1045
    %v1047 = vpop.f32.mrb[0].mxu0
    %1048 = vmatprep.mubr.bf16.mxu0 0
    %1049 = vmatmul.mubr.bf16.gmra.mrb[0].mxu0 %v357
    %v1050 = vpop.f32.mrb[0].mxu0
    %v1051 = vadd.f32 %v958, %v1050
    %v1052 = vpop.f32.mrb[0].mxu0
    %v1053 = vpop.f32.mrb[0].mxu0
    %v1054 = vadd.f32 %v958, %v1053
    %v1055 = vpop.f32.mrb[0].mxu0
    %1056 = vdwg.mxu0
    %1057 = vst [vmem:[#allocation8] sm:$0xff] %v995
    %1058 = vst [vmem:[#allocation8 + $0x8] sm:$0xff] %v998
    %1059 = vst [vmem:[#allocation8 + $0x10] sm:$0xff] %v1003
    %1060 = vst [vmem:[#allocation8 + $0x18] sm:$0xff] %v1006
    %1061 = vst [vmem:[#allocation8 + $0x20] sm:$0xff] %v1011
    %1062 = vst [vmem:[#allocation8 + $0x28] sm:$0xff] %v1014
    %1063 = vst [vmem:[#allocation8 + $0x30] sm:$0xff] %v1019
    %1064 = vst [vmem:[#allocation8 + $0x38] sm:$0xff] %v1022
    %1065 = vst [vmem:[#allocation8 + $0x40] sm:$0xff] %v1027
    %1066 = vst [vmem:[#allocation8 + $0x48] sm:$0xff] %v1030
    %1067 = vst [vmem:[#allocation8 + $0x50] sm:$0xff] %v1035
    %1068 = vst [vmem:[#allocation8 + $0x58] sm:$0xff] %v1038
    %1069 = vst [vmem:[#allocation8 + $0x60] sm:$0xff] %v1043
    %1070 = vst [vmem:[#allocation8 + $0x68] sm:$0xff] %v1046
    %1071 = vst [vmem:[#allocation8 + $0x70] sm:$0xff] %v1051
    %1072 = vst [vmem:[#allocation8 + $0x78] sm:$0xff] %v1054
    // Predicated region
    $region30: #{tpu_custom_call.1} parent=1 // pred_check
      _
    $region31: #{tpu_custom_call.1} parent=1 // pred_check_branch
      %1074 = sbr.rel (0) target = $region33
    $region32: #{tpu_custom_call.1} parent=1 // pred_region
      %s1076 = ssub.s32 2048, 2048
      %1077 = vsyncadd [#allocation4], %s1076
      %s1078 = sshll.u32 [#allocation8], 4
      %s1079 = int_to_ptr.vmem [resolvable:$true] %s1078
      %1084 = dma.vmem_to_hbm [thread:$0]  %s1079, 2048, %s4, [#allocation4], 128, 128, 8
    $region33: #{tpu_custom_call.1} parent=1 // pred_fallthru
      _
    // Predicated region
    $region34: #{tpu_custom_call.1} parent=1 // pred_check
      _
    $region35: #{tpu_custom_call.1} parent=1 // pred_check_branch
      %1086 = sbr.rel (0) target = $region37
    $region36: #{tpu_custom_call.1} parent=1 // pred_region
      %1087 = dma.done [#allocation4], 2048
    $region37: #{tpu_custom_call.1} parent=1 // pred_fallthru
      _
    %1088 = vsyncpa [#allocation3], 1
    %1089 = vsyncpa [#allocation6], 1
    %1090 = vsyncpa [#allocation4], 1

</llo_original>
